<compile_context>
chip_gen: v6e
topology: v6e:2x2x1
jax: 0.10.0
libtpu: 0.0.40
codegen_flags: <defaults>
</compile_context>

<pallas_src>
import functools

import jax
import jax.numpy as jnp
from jax.experimental import pallas as pl
from jax.experimental.pallas import tpu as pltpu

LANE = 128
SUB = 8


def _round_up(n, m):
    return ((n + m - 1) // m) * m


def qnet_kernel(x_ref, w1_ref, b1_ref, w2_ref, b2_ref, out_ref):
    # fc1: bf16 x @ bf16 w1 on the MXU, f32 accumulation; bias + ReLU on the VPU.
    h = jnp.dot(x_ref[...], w1_ref[...], preferred_element_type=jnp.float32)
    h = jnp.maximum(h + b1_ref[...], 0.0)                        # (tb, H_pad) f32
    # fc2 entirely in f32 (w2 is tiny and VMEM-resident across all grid steps);
    # preserves argmax fidelity of near-tied Q-values.
    q = jnp.dot(h, w2_ref[...], preferred_element_type=jnp.float32)
    out_ref[...] = (q + b2_ref[...]).astype(out_ref.dtype)       # lane-dense store


def prepare_qnet_params(w1, b1, w2, b2, *, compute_dtype=jnp.bfloat16):
    """Pad/cast Qnet parameters ONCE (per parameter update), not per forward.

    w1: (S, H), b1: (H,), w2: (H, A), b2: (A,)  -- (in, out) = PyTorch W.T.
    Zero padding is mathematically inert: padded w1 cols & b1 -> relu(0)=0;
    padded w2 rows are 0; padded output cols are sliced away by the wrapper.
    """
    S, H = w1.shape
    A = w2.shape[1]
    H_pad = _round_up(H, LANE)
    A_pad = _round_up(A, LANE)
    w1p = jnp.zeros((S, H_pad), compute_dtype).at[:, :H].set(w1.astype(compute_dtype))
    b1p = jnp.zeros((1, H_pad), jnp.float32).at[:, :H].set(b1.astype(jnp.float32))
    w2p = jnp.zeros((H_pad, A_pad), jnp.float32).at[:H, :A].set(w2.astype(jnp.float32))
    b2p = jnp.zeros((1, A_pad), jnp.float32).at[:, :A].set(b2.astype(jnp.float32))
    return w1p, b1p, w2p, b2p


def qnet_forward(x, params, *, action_dim,
                 block_b=2048,
                 compute_dtype=jnp.bfloat16,
                 out_dtype=jnp.bfloat16):
    """relu(x @ w1 + b1) @ w2 + b2 with pre-padded params from prepare_qnet_params."""
    w1p, b1p, w2p, b2p = params
    B, S = x.shape
    assert S == w1p.shape[0], (S, w1p.shape)
    H_pad = w1p.shape[1]
    A_pad = w2p.shape[1]
    A = action_dim

    out_itemsize = jnp.dtype(out_dtype).itemsize
    # Per-row VMEM footprint: double-buffered x + out tiles, plus f32 h/q temps.
    per_row = 2 * S * 2 + 2 * A_pad * out_itemsize + 2 * H_pad * 4
    # Cap the batch tile so the per-step working set stays well under v5e's
    # 16 MiB scoped-VMEM default (also leaves ample headroom on v7x 64 MiB VMEM).
    max_tb = max(SUB, ((12 << 20) // per_row) // SUB * SUB)

    tb = _round_up(min(block_b, max_tb, _round_up(B, SUB)), SUB)
    grid_b = pl.cdiv(B, tb)
    # v7x megacore: prefer an even grid so both TensorCores get work, but never
    # split a single latency-bound tile.
    if grid_b > 1 and grid_b % 2 == 1:
        tb = _round_up(pl.cdiv(B, grid_b + 1), SUB)
        grid_b = pl.cdiv(B, tb)
    B_pad = grid_b * tb

    # No extra full-batch copy when the batch is already tile-aligned.
    if B_pad == B:
        xp = x.astype(compute_dtype)
    else:
        xp = jnp.zeros((B_pad, S), compute_dtype).at[:B, :].set(x.astype(compute_dtype))

    flops = 2 * B_pad * (S * H_pad + H_pad * A_pad)
    bytes_accessed = (xp.size * 2
                      + w1p.size * 2 + b1p.size * 4 + w2p.size * 4 + b2p.size * 4
                      + B_pad * A_pad * out_itemsize)

    grid_spec = pltpu.PrefetchScalarGridSpec(
        num_scalar_prefetch=0,
        grid=(grid_b,),
        in_specs=[
            pl.BlockSpec((tb, S), lambda i: (i, 0)),          # streamed batch tile
            pl.BlockSpec((S, H_pad), lambda i: (0, 0)),       # weights: VMEM-resident
            pl.BlockSpec((1, H_pad), lambda i: (0, 0)),
            pl.BlockSpec((H_pad, A_pad), lambda i: (0, 0)),
            pl.BlockSpec((1, A_pad), lambda i: (0, 0)),
        ],
        out_specs=pl.BlockSpec((tb, A_pad), lambda i: (i, 0)),
    )

    out_padded = pl.pallas_call(
        qnet_kernel,
        out_shape=jax.ShapeDtypeStruct((B_pad, A_pad), out_dtype),
        grid_spec=grid_spec,
        compiler_params=pltpu.CompilerParams(
            dimension_semantics=(("parallel",) if grid_b > 1 else ("arbitrary",))),
        cost_estimate=pl.CostEstimate(
            flops=flops, transcendentals=0, bytes_accessed=bytes_accessed),
    )(xp, w1p, b1p, w2p, b2p)

    return out_padded[:B, :A]


def reference_forward(x, w1, b1, w2, b2, compute_dtype=jnp.bfloat16):
    """Plain-JAX reference matching the kernel's precision recipe."""
    h = jnp.dot(x.astype(compute_dtype), w1.astype(compute_dtype),
                preferred_element_type=jnp.float32)
    h = jnp.maximum(h + b1, 0.0)
    return jnp.dot(h, w2, preferred_element_type=jnp.float32) + b2


if __name__ == "__main__":
    # Small DQN-like shapes (CartPole-ish state/actions, replay mini-batch).
    batch = 64
    state_dim = 4
    hidden_dim = 128
    action_dim = 2

    key = jax.random.PRNGKey(0)
    kx, k1, k2, k3, k4 = jax.random.split(key, 5)

    x = jax.random.normal(kx, (batch, state_dim), dtype=jnp.float32)

    # Deterministic synthetic parameters (stored as (in, out), i.e. PyTorch W.T).
    bound1 = 1.0 / jnp.sqrt(state_dim)
    bound2 = 1.0 / jnp.sqrt(hidden_dim)
    w1 = jax.random.uniform(k1, (state_dim, hidden_dim), jnp.float32, -bound1, bound1)
    b1 = jax.random.uniform(k2, (hidden_dim,), jnp.float32, -bound1, bound1)
    w2 = jax.random.uniform(k3, (hidden_dim, action_dim), jnp.float32, -bound2, bound2)
    b2 = jax.random.uniform(k4, (action_dim,), jnp.float32, -bound2, bound2)

    # Parameters padded/cast ONCE (per parameter update), outside the forward.
    params = jax.tree_util.tree_map(
        jax.block_until_ready, prepare_qnet_params(w1, b1, w2, b2))

    ref = jax.block_until_ready(reference_forward(x, w1, b1, w2, b2))
    ref_f32 = jnp.maximum(x @ w1 + b1, 0.0) @ w2 + b2

    # 1) Single-tile path (whole batch fits in one grid step), bf16 output.
    fwd = jax.jit(functools.partial(qnet_forward, action_dim=action_dim))
    out = jax.block_until_ready(fwd(x, params))
    assert out.shape == (batch, action_dim), out.shape
    out32 = out.astype(jnp.float32)
    assert jnp.allclose(out32, ref, atol=1e-2, rtol=1e-2), "mismatch vs matched reference"
    assert jnp.allclose(out32, ref_f32, atol=3e-2, rtol=3e-2), "mismatch vs f32 reference"

    # 2) Multi-tile path: force a 4-step grid (even -> both v7x TCs usable),
    #    weights stay VMEM-resident across steps via constant index_maps.
    fwd_tiled = jax.jit(functools.partial(
        qnet_forward, action_dim=action_dim, block_b=16, out_dtype=jnp.float32))
    out_tiled = jax.block_until_ready(fwd_tiled(x, params))
    assert out_tiled.shape == (batch, action_dim), out_tiled.shape
    assert jnp.allclose(out_tiled, ref, atol=1e-4, rtol=1e-4), "tiled mismatch"

    # 3) Ragged batch (exercises the padded slow path + garbage-row slicing).
    x_ragged = x[:50]
    out_ragged = jax.block_until_ready(
        jax.jit(functools.partial(qnet_forward, action_dim=action_dim,
                                  block_b=16))(x_ragged, params))
    assert out_ragged.shape == (50, action_dim), out_ragged.shape
    assert jnp.allclose(out_ragged.astype(jnp.float32), ref[:50],
                        atol=1e-2, rtol=1e-2), "ragged mismatch"

    print("KERNEL_OK")
</pallas_src>

<mosaic_0001>
module attributes {stable_mosaic.version = 11 : i64} {
  func.func @qnet_kernel(%arg0: i32, %arg1: memref<64x4xbf16, #tpu.memory_space<vmem>>, %arg2: memref<4x128xbf16, #tpu.memory_space<vmem>>, %arg3: memref<1x128xf32, #tpu.memory_space<vmem>>, %arg4: memref<128x128xf32, #tpu.memory_space<vmem>>, %arg5: memref<1x128xf32, #tpu.memory_space<vmem>>, %arg6: memref<64x128xbf16, #tpu.memory_space<vmem>>) attributes {dimension_semantics = [#tpu.dimension_semantics<arbitrary>], iteration_bounds = array<i64: 1>, scalar_prefetch = 0 : i64, scratch_operands = 0 : i64, tpu.core_type = #tpu.core_type<tc>, window_params = [{transform_indices = @transform_0, window_bounds = array<i64: 64, 4>}, {pipeline_mode = #tpu.pipeline_mode<synchronous>, transform_indices = @transform_1, window_bounds = array<i64: 4, 128>}, {pipeline_mode = #tpu.pipeline_mode<synchronous>, transform_indices = @transform_2, window_bounds = array<i64: 1, 128>}, {pipeline_mode = #tpu.pipeline_mode<synchronous>, transform_indices = @transform_3, window_bounds = array<i64: 128, 128>}, {pipeline_mode = #tpu.pipeline_mode<synchronous>, transform_indices = @transform_4, window_bounds = array<i64: 1, 128>}, {transform_indices = @transform_5, window_bounds = array<i64: 64, 128>}]} {
    %c0 = arith.constant 0 : index
    %c0_0 = arith.constant 0 : index
    %0 = vector.load %arg1[%c0, %c0_0] : memref<64x4xbf16, #tpu.memory_space<vmem>>, vector<64x4xbf16>
    %c0_1 = arith.constant 0 : index
    %c0_2 = arith.constant 0 : index
    %1 = vector.load %arg2[%c0_1, %c0_2] : memref<4x128xbf16, #tpu.memory_space<vmem>>, vector<4x128xbf16>
    %cst = arith.constant dense<0.000000e+00> : vector<64x128xf32>
    %2 = tpu.matmul %0, %1, %cst {dimension_numbers = #tpu.dot_dimension_numbers<[1], [0], [0], [1], [0, 0, 1, 1], [], []>} : vector<64x4xbf16>, vector<4x128xbf16>, vector<64x128xf32> -> vector<64x128xf32>
    %c0_3 = arith.constant 0 : index
    %c0_4 = arith.constant 0 : index
    %3 = vector.load %arg3[%c0_3, %c0_4] : memref<1x128xf32, #tpu.memory_space<vmem>>, vector<1x128xf32>
    %4 = vector.broadcast %3 : vector<1x128xf32> to vector<64x128xf32>
    %5 = arith.addf %2, %4 : vector<64x128xf32>
    %cst_5 = arith.constant 0.000000e+00 : f32
    %6 = vector.broadcast %cst_5 : f32 to vector<64x128xf32>
    %7 = arith.maximumf %5, %6 : vector<64x128xf32>
    %c0_6 = arith.constant 0 : index
    %c0_7 = arith.constant 0 : index
    %8 = vector.load %arg4[%c0_6, %c0_7] : memref<128x128xf32, #tpu.memory_space<vmem>>, vector<128x128xf32>
    %cst_8 = arith.constant dense<0.000000e+00> : vector<64x128xf32>
    %9 = tpu.matmul %7, %8, %cst_8 {dimension_numbers = #tpu.dot_dimension_numbers<[1], [0], [0], [1], [0, 0, 1, 1], [], []>} : vector<64x128xf32>, vector<128x128xf32>, vector<64x128xf32> -> vector<64x128xf32>
    %c0_9 = arith.constant 0 : index
    %c0_10 = arith.constant 0 : index
    %10 = vector.load %arg5[%c0_9, %c0_10] : memref<1x128xf32, #tpu.memory_space<vmem>>, vector<1x128xf32>
    %11 = vector.broadcast %10 : vector<1x128xf32> to vector<64x128xf32>
    %12 = arith.addf %9, %11 : vector<64x128xf32>
    %13 = arith.truncf %12 : vector<64x128xf32> to vector<64x128xbf16>
    %c0_11 = arith.constant 0 : index
    %c0_12 = arith.constant 0 : index
    %14 = vector.load %arg6[%c0_11, %c0_12] : memref<64x128xbf16, #tpu.memory_space<vmem>>, vector<64x128xbf16>
    tpu.vector_store %arg6[%c0_11, %c0_12], %13 {strides = array<i32>} : memref<64x128xbf16, #tpu.memory_space<vmem>>, vector<64x128xbf16>,
    return
  }
  func.func @transform_0(%arg0: i32) -> (i32, i32) {
    %c0_i32 = arith.constant 0 : i32
    %c0_i32_0 = arith.constant 0 : i32
    return %arg0, %c0_i32 : i32, i32
  }
  func.func @transform_1(%arg0: i32) -> (i32, i32) {
    %c0_i32 = arith.constant 0 : i32
    %c0_i32_0 = arith.constant 0 : i32
    %c0_i32_1 = arith.constant 0 : i32
    return %c0_i32, %c0_i32_0 : i32, i32
  }
  func.func @transform_2(%arg0: i32) -> (i32, i32) {
    %c0_i32 = arith.constant 0 : i32
    %c0_i32_0 = arith.constant 0 : i32
    %c0_i32_1 = arith.constant 0 : i32
    return %c0_i32, %c0_i32_0 : i32, i32
  }
  func.func @transform_3(%arg0: i32) -> (i32, i32) {
    %c0_i32 = arith.constant 0 : i32
    %c0_i32_0 = arith.constant 0 : i32
    %c0_i32_1 = arith.constant 0 : i32
    return %c0_i32, %c0_i32_0 : i32, i32
  }
  func.func @transform_4(%arg0: i32) -> (i32, i32) {
    %c0_i32 = arith.constant 0 : i32
    %c0_i32_0 = arith.constant 0 : i32
    %c0_i32_1 = arith.constant 0 : i32
    return %c0_i32, %c0_i32_0 : i32, i32
  }
  func.func @transform_5(%arg0: i32) -> (i32, i32) {
    %c0_i32 = arith.constant 0 : i32
    %c0_i32_0 = arith.constant 0 : i32
    return %arg0, %c0_i32 : i32, i32
  }
}

</mosaic_0001>

<llo_original>
// kernel: qnet_forward.1
$region0: #{qnet_forward.1}
  #allocation0 [shape = 'u32[]', space=smem, size = 0x4, offset = 0x4, fixed_abs, tag = 'smem constant byte address 0x4 - core index']
  #allocation1 [shape = 'u32[144,128]{1,0:T(1,128)}', space=vmem, size = 0x12000, scoped, tag = 'internal scratch']
  %s0 = inlined_call_operand.vmem [shape: bf16[64,4], index: 0, kind: input, shape index: {}]
  %s1 = inlined_call_operand.vmem [shape: bf16[4,128], index: 1, kind: input, shape index: {}]
  %s2 = inlined_call_operand.vmem [shape: f32[1,128], index: 2, kind: input, shape index: {}]
  %s3 = inlined_call_operand.hbm [shape: f32[128,128], index: 3, kind: input, shape index: {}]
  %s4 = inlined_call_operand.vmem [shape: f32[1,128], index: 4, kind: input, shape index: {}]
  %s5 = inlined_call_operand.vmem [shape: bf16[64,128], index: 5, kind: output, shape index: {}]
  %s6 = sld [smem:[#allocation0]]
  $region34: #{qnet_forward.1} parent=0
    _
  %s8 = ssub.s32 1, %s6
  %s9 = scalar_select 0, %s8, %s6
  $region1: #{qnet_forward.1} parent=0
    #allocation2 [shape = 'u8[65536]{0}', space=vmem, size = 0x10000, scoped, tag = 'input window, operand 3, single buffered']
    #allocation3 [shape = 's32[1]{0}', space=sflag, size = 0x4, scoped, tag = 'scoped memory for qnet_forward.1']
    %10 = vsyncpa [#allocation3], 0
    // Predicated region
    $region2: #{qnet_forward.1} parent=1 // pred_check
      _
    $region3: #{qnet_forward.1} parent=1 // pred_check_branch
      %12 = sbr.rel (0) target = $region5
    $region4: #{qnet_forward.1} parent=1 // pred_region
      _
    $region5: #{qnet_forward.1} parent=1 // pred_fallthru
      _
    // Predicated region
    $region6: #{qnet_forward.1} parent=1 // pred_check
      _
    $region7: #{qnet_forward.1} parent=1 // pred_check_branch
      %14 = sbr.rel (0) target = $region9
    $region8: #{qnet_forward.1} parent=1 // pred_region
      _
    $region9: #{qnet_forward.1} parent=1 // pred_fallthru
      _
    // Predicated region
    $region10: #{qnet_forward.1} parent=1 // pred_check
      _
    $region11: #{qnet_forward.1} parent=1 // pred_check_branch
      %16 = sbr.rel (0) target = $region13
    $region12: #{qnet_forward.1} parent=1 // pred_region
      _
    $region13: #{qnet_forward.1} parent=1 // pred_fallthru
      _
    // Predicated region
    $region14: #{qnet_forward.1} parent=1 // pred_check
      _
    $region15: #{qnet_forward.1} parent=1 // pred_check_branch
      %18 = sbr.rel (0) target = $region17
    $region16: #{qnet_forward.1} parent=1 // pred_region
      %s20 = ssub.s32 2048, 2048
      %21 = vsyncadd [#allocation3], %s20
      %s22 = sshll.u32 [#allocation2], 4
      %s23 = int_to_ptr.vmem [resolvable:$true] %s22
      %28 = dma.hbm_to_vmem [thread:$0]  %s3, 2048, %s23, [#allocation3], 128, 128, 8
    $region17: #{qnet_forward.1} parent=1 // pred_fallthru
      _
    // Predicated region
    $region18: #{qnet_forward.1} parent=1 // pred_check
      _
    $region19: #{qnet_forward.1} parent=1 // pred_check_branch
      %30 = sbr.rel (0) target = $region21
    $region20: #{qnet_forward.1} parent=1 // pred_region
      _
    $region21: #{qnet_forward.1} parent=1 // pred_fallthru
      _
    // Predicated region
    $region22: #{qnet_forward.1} parent=1 // pred_check
      _
    $region23: #{qnet_forward.1} parent=1 // pred_check_branch
      %32 = sbr.rel (0) target = $region25
    $region24: #{qnet_forward.1} parent=1 // pred_region
      %33 = dma.done [#allocation3], 2048
    $region25: #{qnet_forward.1} parent=1 // pred_fallthru
      _
    %v35 = vld [vmem:[%s0] sm:$0xf]
    %v36 = vld [vmem:[%s0 + $0x4] sm:$0xf]
    %v37 = vld [vmem:[%s0 + $0x8] sm:$0xf]
    %v38 = vld [vmem:[%s0 + $0xc] sm:$0xf]
    %v39 = vld [vmem:[%s0 + $0x10] sm:$0xf]
    %v40 = vld [vmem:[%s0 + $0x14] sm:$0xf]
    %v41 = vld [vmem:[%s0 + $0x18] sm:$0xf]
    %v42 = vld [vmem:[%s0 + $0x1c] sm:$0xf]
    %v43 = vld [vmem:[%s1] sm:$0x3]
    %v44 = vld [vmem:[%s2] sm:$0x1]
    %v46 = vlaneseq
    %v47 = vshrl.u32 %v46, 7
    %v48 = vsub.s32 0, %v47
    %v49 = vrot.slane %v44, %v48
    %v59 = vunpack.c.l.b16 %v35
    %v60 = vunpack.c.l.b16 %v36
    %v61 = vunpack.c.l.b16 %v37
    %v62 = vunpack.c.l.b16 %v38
    %v63 = vunpack.c.l.b16 %v39
    %v64 = vunpack.c.l.b16 %v40
    %v65 = vunpack.c.l.b16 %v41
    %v66 = vunpack.c.l.b16 %v42
    %v67 = vpack.c.b16 %v60, %v59
    %v68 = vpack.c.b16 %v62, %v61
    %v69 = vpack.c.b16 %v64, %v63
    %v70 = vpack.c.b16 %v66, %v65
    %vm71 = vcmask 31744
    %v73 = vsel %vm71, %v67, 0
    %v76 = vsel %vm71, %v68, 0
    %v79 = vsel %vm71, %v69, 0
    %v82 = vsel %vm71, %v70, 0
    %vm84 = vcmask 1041408
    %v86 = vsel %vm84, %v43, 0
    %88 = vmatprep.subr.bf16.mxu0 0
    %89 = vmatpush1.bf16.msra.mxu0 0
    %90 = vmatprep.subr.bf16.mxu0 0
    %91 = vmatpush1.bf16.msra.mxu0 0
    %92 = vmatprep.subr.bf16.mxu0 0
    %93 = vmatpush1.bf16.msra.mxu0 0
    %94 = vmatprep.subr.bf16.mxu0 0
    %95 = vmatpush1.bf16.msra.mxu0 0
    %96 = vmatprep.subr.bf16.mxu0 0
    %97 = vmatpush1.bf16.msra.mxu0 0
    %98 = vmatprep.subr.bf16.mxu0 0
    %99 = vmatpush1.bf16.msra.mxu0 0
    %100 = vmatprep.subr.bf16.mxu0 0
    %101 = vmatpush1.bf16.msra.mxu0 0
    %102 = vmatprep.subr.bf16.mxu0 0
    %103 = vmatpush1.bf16.msra.mxu0 %v86
    %104 = vmatprep.subr.bf16.mxu0 0
    %105 = vmatpush2.bf16.msra.mxu0 0
    %106 = vmatprep.subr.bf16.mxu0 0
    %107 = vmatpush2.bf16.msra.mxu0 0
    %108 = vmatprep.subr.bf16.mxu0 0
    %109 = vmatpush2.bf16.msra.mxu0 0
    %110 = vmatprep.subr.bf16.mxu0 0
    %111 = vmatpush2.bf16.msra.mxu0 0
    %112 = vmatprep.subr.bf16.mxu0 0
    %113 = vmatpush2.bf16.msra.mxu0 0
    %114 = vmatprep.subr.bf16.mxu0 0
    %115 = vmatpush2.bf16.msra.mxu0 0
    %116 = vmatprep.subr.bf16.mxu0 0
    %117 = vmatpush2.bf16.msra.mxu0 0
    %118 = vmatprep.subr.bf16.mxu0 0
    %119 = vmatpush2.bf16.msra.mxu0 0
    %120 = vmatprep.mubr.bf16.mxu0 0
    %121 = vmatmul.mubr.bf16.gmra.mxu0 %v73
    %v122 = vpop.f32.mrf.mxu0
    %v123 = vadd.f32 %v49, %v122
    %v124 = vpop.f32.mrf.mxu0
    %v125 = vpop.f32.mrf.mxu0
    %v126 = vadd.f32 %v49, %v125
    %v127 = vpop.f32.mrf.mxu0
    %128 = vmatprep.mubr.bf16.mxu0 0
    %129 = vmatmul.mubr.bf16.gmra.mxu0 %v76
    %v130 = vpop.f32.mrf.mxu0
    %v131 = vadd.f32 %v49, %v130
    %v132 = vpop.f32.mrf.mxu0
    %v133 = vpop.f32.mrf.mxu0
    %v134 = vadd.f32 %v49, %v133
    %v135 = vpop.f32.mrf.mxu0
    %136 = vmatprep.mubr.bf16.mxu0 0
    %137 = vmatmul.mubr.bf16.gmra.mxu0 %v79
    %v138 = vpop.f32.mrf.mxu0
    %v139 = vadd.f32 %v49, %v138
    %v140 = vpop.f32.mrf.mxu0
    %v141 = vpop.f32.mrf.mxu0
    %v142 = vadd.f32 %v49, %v141
    %v143 = vpop.f32.mrf.mxu0
    %144 = vmatprep.mubr.bf16.mxu0 0
    %145 = vmatmul.mubr.bf16.gmra.mxu0 %v82
    %v146 = vpop.f32.mrf.mxu0
    %v147 = vadd.f32 %v49, %v146
    %v148 = vpop.f32.mrf.mxu0
    %v149 = vpop.f32.mrf.mxu0
    %v150 = vadd.f32 %v49, %v149
    %v151 = vpop.f32.mrf.mxu0
    %152 = vdwg.mxu0
    %v153 = vmax.f32 %v123, 0.0
    %v154 = vmax.f32 %v126, 0.0
    %v155 = vmax.f32 %v131, 0.0
    %v156 = vmax.f32 %v134, 0.0
    %v157 = vmax.f32 %v139, 0.0
    %v158 = vmax.f32 %v142, 0.0
    %v159 = vmax.f32 %v147, 0.0
    %v160 = vmax.f32 %v150, 0.0
    %v161 = vld [vmem:[#allocation2] sm:$0xff]
    %v162 = vld [vmem:[#allocation2 + $0x8] sm:$0xff]
    %v163 = vld [vmem:[#allocation2 + $0x10] sm:$0xff]
    %v164 = vld [vmem:[#allocation2 + $0x18] sm:$0xff]
    %v165 = vld [vmem:[#allocation2 + $0x20] sm:$0xff]
    %v166 = vld [vmem:[#allocation2 + $0x28] sm:$0xff]
    %v167 = vld [vmem:[#allocation2 + $0x30] sm:$0xff]
    %v168 = vld [vmem:[#allocation2 + $0x38] sm:$0xff]
    %v169 = vld [vmem:[#allocation2 + $0x40] sm:$0xff]
    %v170 = vld [vmem:[#allocation2 + $0x48] sm:$0xff]
    %v171 = vld [vmem:[#allocation2 + $0x50] sm:$0xff]
    %v172 = vld [vmem:[#allocation2 + $0x58] sm:$0xff]
    %v173 = vld [vmem:[#allocation2 + $0x60] sm:$0xff]
    %v174 = vld [vmem:[#allocation2 + $0x68] sm:$0xff]
    %v175 = vld [vmem:[#allocation2 + $0x70] sm:$0xff]
    %v176 = vld [vmem:[#allocation2 + $0x78] sm:$0xff]
    %v177 = vld [vmem:[%s4] sm:$0x1]
    %v179 = vlaneseq
    %v180 = vshrl.u32 %v179, 7
    %v181 = vsub.s32 0, %v180
    %v182 = vrot.slane %v177, %v181
    %184 = vmatprep.subr.mxu0 0.0
    %185 = vmatpush1.msra.mxu0 %v176
    %186 = vmatprep.subr.mxu0 0.0
    %187 = vmatpush1.msra.mxu0 %v175
    %188 = vmatprep.subr.mxu0 0.0
    %189 = vmatpush1.msra.mxu0 %v174
    %190 = vmatprep.subr.mxu0 0.0
    %191 = vmatpush1.msra.mxu0 %v173
    %192 = vmatprep.subr.mxu0 0.0
    %193 = vmatpush1.msra.mxu0 %v172
    %194 = vmatprep.subr.mxu0 0.0
    %195 = vmatpush1.msra.mxu0 %v171
    %196 = vmatprep.subr.mxu0 0.0
    %197 = vmatpush1.msra.mxu0 %v170
    %198 = vmatprep.subr.mxu0 0.0
    %199 = vmatpush1.msra.mxu0 %v169
    %200 = vmatprep.subr.mxu0 0.0
    %201 = vmatpush1.msra.mxu0 %v168
    %202 = vmatprep.subr.mxu0 0.0
    %203 = vmatpush1.msra.mxu0 %v167
    %204 = vmatprep.subr.mxu0 0.0
    %205 = vmatpush1.msra.mxu0 %v166
    %206 = vmatprep.subr.mxu0 0.0
    %207 = vmatpush1.msra.mxu0 %v165
    %208 = vmatprep.subr.mxu0 0.0
    %209 = vmatpush1.msra.mxu0 %v164
    %210 = vmatprep.subr.mxu0 0.0
    %211 = vmatpush1.msra.mxu0 %v163
    %212 = vmatprep.subr.mxu0 0.0
    %213 = vmatpush1.msra.mxu0 %v162
    %214 = vmatprep.subr.mxu0 0.0
    %215 = vmatpush1.msra.mxu0 %v161
    %216 = vmatprep.subr.mxu0 0.0
    %217 = vmatpush2.msra.mxu0 0.0
    %218 = vmatprep.subr.mxu0 0.0
    %219 = vmatpush2.msra.mxu0 0.0
    %220 = vmatprep.subr.mxu0 0.0
    %221 = vmatpush2.msra.mxu0 0.0
    %222 = vmatprep.subr.mxu0 0.0
    %223 = vmatpush2.msra.mxu0 0.0
    %224 = vmatprep.subr.mxu0 0.0
    %225 = vmatpush2.msra.mxu0 0.0
    %226 = vmatprep.subr.mxu0 0.0
    %227 = vmatpush2.msra.mxu0 0.0
    %228 = vmatprep.subr.mxu0 0.0
    %229 = vmatpush2.msra.mxu0 0.0
    %230 = vmatprep.subr.mxu0 0.0
    %231 = vmatpush2.msra.mxu0 0.0
    %232 = vmatprep.subr.mxu0 0.0
    %233 = vmatpush2.msra.mxu0 0.0
    %234 = vmatprep.subr.mxu0 0.0
    %235 = vmatpush2.msra.mxu0 0.0
    %236 = vmatprep.subr.mxu0 0.0
    %237 = vmatpush2.msra.mxu0 0.0
    %238 = vmatprep.subr.mxu0 0.0
    %239 = vmatpush2.msra.mxu0 0.0
    %240 = vmatprep.subr.mxu0 0.0
    %241 = vmatpush2.msra.mxu0 0.0
    %242 = vmatprep.subr.mxu0 0.0
    %243 = vmatpush2.msra.mxu0 0.0
    %244 = vmatprep.subr.mxu0 0.0
    %245 = vmatpush2.msra.mxu0 0.0
    %246 = vmatprep.subr.mxu0 0.0
    %247 = vmatpush2.msra.mxu0 0.0
    %248 = vmatprep.mubr.f32.mxu0 0.0
    %249 = vmatmul.mubr.f32.gmra.mxu0 %v153
    %v250 = vpop.f32.mrf.mxu0
    %v251 = vadd.f32 %v182, %v250
    %v252 = vpop.f32.mrf.mxu0
    %253 = vmatprep.mubr.f32.mxu0 0.0
    %254 = vmatmul.mubr.f32.gmra.mxu0 %v154
    %v255 = vpop.f32.mrf.mxu0
    %v256 = vadd.f32 %v182, %v255
    %v257 = vpop.f32.mrf.mxu0
    %258 = vmatprep.mubr.f32.mxu0 0.0
    %259 = vmatmul.mubr.f32.gmra.mxu0 %v155
    %v260 = vpop.f32.mrf.mxu0
    %v261 = vadd.f32 %v182, %v260
    %v262 = vpop.f32.mrf.mxu0
    %263 = vmatprep.mubr.f32.mxu0 0.0
    %264 = vmatmul.mubr.f32.gmra.mxu0 %v156
    %v265 = vpop.f32.mrf.mxu0
    %v266 = vadd.f32 %v182, %v265
    %v267 = vpop.f32.mrf.mxu0
    %268 = vmatprep.mubr.f32.mxu0 0.0
    %269 = vmatmul.mubr.f32.gmra.mxu0 %v157
    %v270 = vpop.f32.mrf.mxu0
    %v271 = vadd.f32 %v182, %v270
    %v272 = vpop.f32.mrf.mxu0
    %273 = vmatprep.mubr.f32.mxu0 0.0
    %274 = vmatmul.mubr.f32.gmra.mxu0 %v158
    %v275 = vpop.f32.mrf.mxu0
    %v276 = vadd.f32 %v182, %v275
    %v277 = vpop.f32.mrf.mxu0
    %278 = vmatprep.mubr.f32.mxu0 0.0
    %279 = vmatmul.mubr.f32.gmra.mxu0 %v159
    %v280 = vpop.f32.mrf.mxu0
    %v281 = vadd.f32 %v182, %v280
    %v282 = vpop.f32.mrf.mxu0
    %283 = vmatprep.mubr.f32.mxu0 0.0
    %284 = vmatmul.mubr.f32.gmra.mxu0 %v160
    %v285 = vpop.f32.mrf.mxu0
    %v286 = vadd.f32 %v182, %v285
    %v287 = vpop.f32.mrf.mxu0
    %288 = vdwg.mxu0
    %v289 = vpack.c.bf16 %v256, %v251
    %v290 = vpack.c.bf16 %v266, %v261
    %v291 = vpack.c.bf16 %v276, %v271
    %v292 = vpack.c.bf16 %v286, %v281
    %v297 = vunpack.c.l.b16 %v289
    %v298 = vunpack.c.h.b16 %v289
    %v299 = vunpack.c.l.b16 %v290
    %v300 = vunpack.c.h.b16 %v290
    %v301 = vunpack.c.l.b16 %v291
    %v302 = vunpack.c.h.b16 %v291
    %v303 = vunpack.c.l.b16 %v292
    %v304 = vunpack.c.h.b16 %v292
    %v305 = vpack.c.b16 %v297, %v297
    %v306 = vpack.c.b16 %v298, %v298
    %v307 = vpack.c.b16 %v299, %v299
    %v308 = vpack.c.b16 %v300, %v300
    %v309 = vpack.c.b16 %v301, %v301
    %v310 = vpack.c.b16 %v302, %v302
    %v311 = vpack.c.b16 %v303, %v303
    %v312 = vpack.c.b16 %v304, %v304
    %321 = vst [vmem:[%s5] sm:$0xf] %v305
    %322 = vst [vmem:[%s5 + $0x4] sm:$0xf] %v306
    %323 = vst [vmem:[%s5 + $0x8] sm:$0xf] %v307
    %324 = vst [vmem:[%s5 + $0xc] sm:$0xf] %v308
    %325 = vst [vmem:[%s5 + $0x10] sm:$0xf] %v309
    %326 = vst [vmem:[%s5 + $0x14] sm:$0xf] %v310
    %327 = vst [vmem:[%s5 + $0x18] sm:$0xf] %v311
    %328 = vst [vmem:[%s5 + $0x1c] sm:$0xf] %v312
    // Predicated region
    $region26: #{qnet_forward.1} parent=1 // pred_check
      _
    $region27: #{qnet_forward.1} parent=1 // pred_check_branch
      %330 = sbr.rel (0) target = $region29
    $region28: #{qnet_forward.1} parent=1 // pred_region
      _
    $region29: #{qnet_forward.1} parent=1 // pred_fallthru
      _
    // Predicated region
    $region30: #{qnet_forward.1} parent=1 // pred_check
      _
    $region31: #{qnet_forward.1} parent=1 // pred_check_branch
      %332 = sbr.rel (0) target = $region33
    $region32: #{qnet_forward.1} parent=1 // pred_region
      _
    $region33: #{qnet_forward.1} parent=1 // pred_fallthru
      _
    %333 = vsyncpa [#allocation3], 1

</llo_original>
